<compile_context>
chip_gen: v5e
topology: v5e:2x2
jax: 0.10.0
libtpu: 0.0.40
codegen_flags: <defaults>
</compile_context>

<pallas_src>
import jax
import jax.numpy as jnp
from jax import lax
from jax.experimental import pallas as pl
from jax.experimental.pallas import tpu as pltpu

UNK = "<UNK>"
PAD = "<PAD>"


def _round_up(x, m):
    return ((x + m - 1) // m) * m


# ----------------------------- Pallas kernel ------------------------------ #
def _node_embedding_kernel(idx_ref, tab_ref, out_ref):
    # idx_ref: (tile_f, 2*F) int32    -- per folded output row: F token targets
    #                                    then F type targets in [0, Vpad), or
    #                                    -1 for padding nodes (match nothing).
    # tab_ref: (3*F, kblk, lane) bf16 -- one vocab slab of the folded table,
    #                                    3 bf16 planes (hi/mid/lo) per fold.
    # out_ref: (tile_f, lane) f32     -- lane-dense output block, resident
    #                                    (accumulator) across the vocab axis.
    tile_f, lane = out_ref.shape
    fold = idx_ref.shape[1] // 2
    kblk = tab_ref.shape[1]
    k0 = pl.program_id(1) * kblk

    @pl.when(pl.program_id(1) == 0)
    def _():
        out_ref[...] = jnp.zeros_like(out_ref)

    # Absolute vocab index of every column in this slab.
    col = k0 + lax.broadcasted_iota(jnp.int32, (tile_f, kblk), 1)

    for f in range(fold):                        # static, small (F = 128 // H)
        tok = idx_ref[:, f:f + 1]                # token target of node r*F + f
        typ = idx_ref[:, fold + f:fold + f + 1]  # type target (Vt already added)
        # Two-hot selection row.  {0,1} is exact in bf16, so the DEFAULT-
        # precision bf16 dots below reproduce exact table-row copies.
        sel = jnp.logical_or(col == tok, col == typ).astype(jnp.bfloat16)
        for p in range(3):                       # hi / mid / lo planes
            out_ref[...] += jnp.dot(sel, tab_ref[3 * f + p],
                                    preferred_element_type=jnp.float32)


# ------------------------------- wrapper ----------------------------------- #
def _build_folded_table_planes(token_table, type_table, *, slab_bytes=4 << 20):
    """Concat token+type tables, fold F = 128//H node rows into one 128-lane
    output row, and split into 3 bf16 planes whose sum reproduces the f32
    table to ~1 ulp.  Returns (planes, vpad, kblk, fold, lane)."""
    vt, h = token_table.shape
    vy, h2 = type_table.shape
    assert h == h2
    if h % 128 == 0:
        fold, lane = 1, h
    else:
        # TODO(synk): general H that neither divides nor is a multiple of 128
        # would need lane-padding of the embedding dim; not required here.
        assert 128 % h == 0, "h_emb must divide 128 or be a multiple of 128"
        fold, lane = 128 // h, 128
    vcat = vt + vy

    # Vocab slab so one streamed table block stays under slab_bytes.
    kblk = max(128, (slab_bytes // (fold * 3 * lane * 2)) // 128 * 128)
    vpad = _round_up(vcat, 128)
    if vpad <= kblk:
        kblk = vpad
    else:
        vpad = _round_up(vpad, kblk)

    cat = jnp.concatenate([token_table.astype(jnp.float32),
                           type_table.astype(jnp.float32)], axis=0)
    cat = jnp.pad(cat, ((0, vpad - vcat), (0, 0)))            # (vpad, h)

    folded = jnp.zeros((fold, vpad, lane), dtype=jnp.float32)
    for f in range(fold):
        folded = folded.at[f, :, f * h:(f + 1) * h].set(cat)

    # 3-way bf16 split: hi + mid + lo == folded to ~1 f32 ulp.  Two planes
    # would NOT be exact; three keep the gather bit-faithful at 3 MXU passes
    # (vs 6 for a single f32 dot at Precision.HIGHEST).
    hi = folded.astype(jnp.bfloat16)
    r1 = folded - hi.astype(jnp.float32)
    mid = r1.astype(jnp.bfloat16)
    lo = (r1 - mid.astype(jnp.float32)).astype(jnp.bfloat16)
    planes = jnp.stack([hi, mid, lo], axis=1).reshape(3 * fold, vpad, lane)
    return planes, vpad, kblk, fold, lane


def node_embedding_forward(token_ids, type_ids, token_table, type_table, *, tile=2048):
    """token_ids, type_ids: [N] int; tables: [V*, H] float32 -> [N, H] float32."""
    n = int(token_ids.shape[0])
    vt, h = token_table.shape
    planes, vpad, kblk, fold, lane = _build_folded_table_planes(token_table, type_table)

    # tile = nodes per node-grid step (primary tuning knob); must be a multiple
    # of 8 * fold (sublane alignment of the folded output rows).
    unit = 8 * fold
    n_unit = _round_up(n, unit)
    tile = max(unit, min(_round_up(tile, unit), n_unit))
    # Keep >= 2 steps along the node axis whenever possible so the "parallel"
    # grid axis can be sharded across both TensorCores on v7x.
    if tile >= n_unit and n_unit >= 2 * unit:
        tile = _round_up(n_unit // 2, unit)
    n_pad = _round_up(n, tile)

    # Per-node targets into the concatenated vocab; padded nodes get -1, which
    # matches nothing -> zero output rows, sliced off below.
    tok_t = jnp.pad(token_ids.astype(jnp.int32), (0, n_pad - n), constant_values=-1)
    typ_t = jnp.pad(type_ids.astype(jnp.int32) + vt, (0, n_pad - n), constant_values=-1)
    n_f = n_pad // fold
    idx = jnp.concatenate(
        [tok_t.reshape(n_f, fold), typ_t.reshape(n_f, fold)], axis=1)   # (n_f, 2F)

    tile_f = tile // fold
    nk = vpad // kblk
    grid = (n_pad // tile, nk)      # node axis (parallel), vocab axis (reduction, last)

    # Explicit VMEM budget: double-buffered table slab + idx + output blocks
    # plus slack for the in-kernel two-hot / iota temporaries.  Floor at the
    # 32 MiB scoped default, cap at 48 MiB (< physical on v5e/v6e/v7x).
    est = (2 * (3 * fold) * kblk * lane * 2       # table slabs (bf16, x2 buffers)
           + 2 * tile_f * 128 * 4                 # idx block (lane-padded int32)
           + 2 * tile_f * lane * 4                # output block
           + 4 * tile_f * max(kblk, lane) * 4)    # sel/col/dot-staging slack
    vmem_limit = int(min(max(2 * est, 32 << 20), 48 << 20))

    out_folded = pl.pallas_call(
        _node_embedding_kernel,
        out_shape=jax.ShapeDtypeStruct((n_f, lane), jnp.float32),
        grid=grid,
        in_specs=[
            pl.BlockSpec((tile_f, 2 * fold), lambda i, k: (i, 0)),     # fused id targets
            # Vocab-streamed folded table slabs.  (With nk == 1 this block is
            # constant; pipeline_mode=pl.Buffered(1) could single-buffer it.)
            pl.BlockSpec((3 * fold, kblk, lane), lambda i, k: (0, k, 0)),
        ],
        out_specs=pl.BlockSpec((tile_f, lane), lambda i, k: (i, 0)),
        compiler_params=pltpu.CompilerParams(
            dimension_semantics=("parallel", "arbitrary"),
            vmem_limit_bytes=vmem_limit),
    )(idx, planes)

    # Row-major folded buffer is bit-identical to the (n_pad, h) layout.
    return out_folded.reshape(n_pad, h)[:n]


# ----------------------- module-equivalent parameter setup ----------------- #
class NodeEmbeddingParams:
    """Mirrors INodeEmbedding.__init__ bookkeeping + deterministic weights."""

    def __init__(self, token_to_id, type_to_id, h_emb, key):
        self.token_to_id = dict(token_to_id)
        self.type_to_id = dict(type_to_id)
        self.h_emb = h_emb
        if UNK not in self.token_to_id:
            self.token_to_id[UNK] = len(self.token_to_id)
        if UNK not in self.type_to_id:
            self.type_to_id[UNK] = len(self.type_to_id)
        self.token_vocab_size = len(self.token_to_id)
        self.type_vocab_size = len(self.type_to_id)
        self.token_pad_index = self.token_to_id[PAD] if PAD in self.token_to_id else -1
        self.type_pad_index = self.type_to_id[PAD] if PAD in self.type_to_id else -1

        k_tok, k_typ = jax.random.split(key)
        tok_tab = jax.random.normal(
            k_tok, (self.token_vocab_size, h_emb), dtype=jnp.float32)
        typ_tab = jax.random.normal(
            k_typ, (self.type_vocab_size, h_emb), dtype=jnp.float32)
        # nn.Embedding(padding_idx=...) keeps the pad row at zero.
        if self.token_pad_index >= 0:
            tok_tab = tok_tab.at[self.token_pad_index].set(0.0)
        if self.type_pad_index >= 0:
            typ_tab = typ_tab.at[self.type_pad_index].set(0.0)
        self.token_table = tok_tab
        self.type_table = typ_tab


# ----------------------------------- main ---------------------------------- #
if __name__ == "__main__":
    key = jax.random.PRNGKey(0)
    k_params, k_tok_ids, k_typ_ids = jax.random.split(key, 3)

    # Small deterministic vocabularies (module's __init__ appends UNK).
    token_to_id = {f"tok{i}": i for i in range(14)}
    token_to_id[PAD] = len(token_to_id)
    type_to_id = {f"type{i}": i for i in range(7)}
    type_to_id[PAD] = len(type_to_id)

    h_emb = 32
    params = NodeEmbeddingParams(token_to_id, type_to_id, h_emb, k_params)

    # "Batched graph" node features: 64 nodes with token / type ids.
    n_nodes = 64
    token_ids = jax.random.randint(
        k_tok_ids, (n_nodes,), 0, params.token_vocab_size, dtype=jnp.int32)
    type_ids = jax.random.randint(
        k_typ_ids, (n_nodes,), 0, params.type_vocab_size, dtype=jnp.int32)

    out = node_embedding_forward(
        token_ids, type_ids, params.token_table, params.type_table, tile=2048)
    out = jax.block_until_ready(out)

    # Pure-JAX reference check (gather + sum).
    ref = jnp.take(params.token_table, token_ids, axis=0) + jnp.take(
        params.type_table, type_ids, axis=0)
    assert out.shape == (n_nodes, h_emb)
    assert jnp.allclose(out, ref, atol=1e-6, rtol=1e-5)

    print("KERNEL_OK")
</pallas_src>

<mosaic_0001>
module attributes {stable_mosaic.version = 11 : i64} {
  func.func @_node_embedding_kernel(%arg0: i32, %arg1: i32, %arg2: memref<8x8xi32, #tpu.memory_space<vmem>>, %arg3: memref<12x128x128xbf16, #tpu.memory_space<vmem>>, %arg4: memref<8x128xf32, #tpu.memory_space<vmem>>) attributes {dimension_semantics = [#tpu.dimension_semantics<parallel>, #tpu.dimension_semantics<arbitrary>], iteration_bounds = array<i64: 2, 1>, scalar_prefetch = 0 : i64, scratch_operands = 0 : i64, tpu.core_type = #tpu.core_type<tc>, window_params = [{transform_indices = @transform_0, window_bounds = array<i64: 8, 8>}, {transform_indices = @transform_1, window_bounds = array<i64: 12, 128, 128>}, {transform_indices = @transform_2, window_bounds = array<i64: 8, 128>}]} {
    %c128_i32 = arith.constant 128 : i32
    %0 = arith.muli %arg1, %c128_i32 : i32
    %c0_i32 = arith.constant 0 : i32
    %1 = arith.cmpi eq, %arg1, %c0_i32 : i32
    %2 = arith.extui %1 : i1 to i32
    %c0_i32_0 = arith.constant 0 : i32
    %3 = arith.cmpi ne, %2, %c0_i32_0 : i32
    scf.if %3 {
      %cst_100 = arith.constant 0.000000e+00 : f32
      %119 = vector.broadcast %cst_100 : f32 to vector<8x128xf32>
      %c0_101 = arith.constant 0 : index
      %c0_102 = arith.constant 0 : index
      %120 = vector.load %arg4[%c0_101, %c0_102] : memref<8x128xf32, #tpu.memory_space<vmem>>, vector<8x128xf32>
      tpu.vector_store %arg4[%c0_101, %c0_102], %119 {strides = array<i32>} : memref<8x128xf32, #tpu.memory_space<vmem>>, vector<8x128xf32>,
    } else {
    }
    %4 = tpu.iota {dimensions = array<i32: 1>} : vector<8x128xi32>
    %5 = vector.broadcast %0 : i32 to vector<8x128xi32>
    %6 = arith.addi %5, %4 : vector<8x128xi32>
    %c0 = arith.constant 0 : index
    %c0_1 = arith.constant 0 : index
    %7 = vector.load %arg2[%c0, %c0_1] : memref<8x8xi32, #tpu.memory_space<vmem>>, vector<8x1xi32>
    %c0_2 = arith.constant 0 : index
    %c4 = arith.constant 4 : index
    %8 = vector.load %arg2[%c0_2, %c4] : memref<8x8xi32, #tpu.memory_space<vmem>>, vector<8x1xi32>
    %9 = vector.broadcast %7 : vector<8x1xi32> to vector<8x128xi32>
    %10 = arith.cmpi eq, %6, %9 : vector<8x128xi32>
    %11 = vector.broadcast %8 : vector<8x1xi32> to vector<8x128xi32>
    %12 = arith.cmpi eq, %6, %11 : vector<8x128xi32>
    %13 = arith.ori %10, %12 : vector<8x128xi1>
    %14 = arith.extui %13 : vector<8x128xi1> to vector<8x128xi32>
    %15 = arith.sitofp %14 : vector<8x128xi32> to vector<8x128xf32>
    %16 = arith.truncf %15 : vector<8x128xf32> to vector<8x128xbf16>
    %c0_3 = arith.constant 0 : index
    %c0_4 = arith.constant 0 : index
    %17 = vector.load %arg4[%c0_3, %c0_4] : memref<8x128xf32, #tpu.memory_space<vmem>>, vector<8x128xf32>
    %c0_5 = arith.constant 0 : index
    %c0_6 = arith.constant 0 : index
    %c0_7 = arith.constant 0 : index
    %18 = vector.load %arg3[%c0_5, %c0_6, %c0_7] : memref<12x128x128xbf16, #tpu.memory_space<vmem>>, vector<1x128x128xbf16>
    %19 = vector.shape_cast %18 : vector<1x128x128xbf16> to vector<128x128xbf16>
    %cst = arith.constant dense<0.000000e+00> : vector<8x128xf32>
    %20 = tpu.matmul %16, %19, %cst {dimension_numbers = #tpu.dot_dimension_numbers<[1], [0], [0], [1], [0, 0, 1, 1], [], []>} : vector<8x128xbf16>, vector<128x128xbf16>, vector<8x128xf32> -> vector<8x128xf32>
    %21 = arith.addf %17, %20 : vector<8x128xf32>
    %c0_8 = arith.constant 0 : index
    %c0_9 = arith.constant 0 : index
    %22 = vector.load %arg4[%c0_8, %c0_9] : memref<8x128xf32, #tpu.memory_space<vmem>>, vector<8x128xf32>
    tpu.vector_store %arg4[%c0_8, %c0_9], %21 {strides = array<i32>} : memref<8x128xf32, #tpu.memory_space<vmem>>, vector<8x128xf32>,
    %c0_10 = arith.constant 0 : index
    %c0_11 = arith.constant 0 : index
    %23 = vector.load %arg4[%c0_10, %c0_11] : memref<8x128xf32, #tpu.memory_space<vmem>>, vector<8x128xf32>
    %c1 = arith.constant 1 : index
    %c0_12 = arith.constant 0 : index
    %c0_13 = arith.constant 0 : index
    %24 = vector.load %arg3[%c1, %c0_12, %c0_13] : memref<12x128x128xbf16, #tpu.memory_space<vmem>>, vector<1x128x128xbf16>
    %25 = vector.shape_cast %24 : vector<1x128x128xbf16> to vector<128x128xbf16>
    %cst_14 = arith.constant dense<0.000000e+00> : vector<8x128xf32>
    %26 = tpu.matmul %16, %25, %cst_14 {dimension_numbers = #tpu.dot_dimension_numbers<[1], [0], [0], [1], [0, 0, 1, 1], [], []>} : vector<8x128xbf16>, vector<128x128xbf16>, vector<8x128xf32> -> vector<8x128xf32>
    %27 = arith.addf %23, %26 : vector<8x128xf32>
    %c0_15 = arith.constant 0 : index
    %c0_16 = arith.constant 0 : index
    %28 = vector.load %arg4[%c0_15, %c0_16] : memref<8x128xf32, #tpu.memory_space<vmem>>, vector<8x128xf32>
    tpu.vector_store %arg4[%c0_15, %c0_16], %27 {strides = array<i32>} : memref<8x128xf32, #tpu.memory_space<vmem>>, vector<8x128xf32>,
    %c0_17 = arith.constant 0 : index
    %c0_18 = arith.constant 0 : index
    %29 = vector.load %arg4[%c0_17, %c0_18] : memref<8x128xf32, #tpu.memory_space<vmem>>, vector<8x128xf32>
    %c2 = arith.constant 2 : index
    %c0_19 = arith.constant 0 : index
    %c0_20 = arith.constant 0 : index
    %30 = vector.load %arg3[%c2, %c0_19, %c0_20] : memref<12x128x128xbf16, #tpu.memory_space<vmem>>, vector<1x128x128xbf16>
    %31 = vector.shape_cast %30 : vector<1x128x128xbf16> to vector<128x128xbf16>
    %cst_21 = arith.constant dense<0.000000e+00> : vector<8x128xf32>
    %32 = tpu.matmul %16, %31, %cst_21 {dimension_numbers = #tpu.dot_dimension_numbers<[1], [0], [0], [1], [0, 0, 1, 1], [], []>} : vector<8x128xbf16>, vector<128x128xbf16>, vector<8x128xf32> -> vector<8x128xf32>
    %33 = arith.addf %29, %32 : vector<8x128xf32>
    %c0_22 = arith.constant 0 : index
    %c0_23 = arith.constant 0 : index
    %34 = vector.load %arg4[%c0_22, %c0_23] : memref<8x128xf32, #tpu.memory_space<vmem>>, vector<8x128xf32>
    tpu.vector_store %arg4[%c0_22, %c0_23], %33 {strides = array<i32>} : memref<8x128xf32, #tpu.memory_space<vmem>>, vector<8x128xf32>,
    %c0_24 = arith.constant 0 : index
    %c1_25 = arith.constant 1 : index
    %35 = vector.load %arg2[%c0_24, %c1_25] : memref<8x8xi32, #tpu.memory_space<vmem>>, vector<8x1xi32>
    %c0_26 = arith.constant 0 : index
    %c5 = arith.constant 5 : index
    %36 = vector.load %arg2[%c0_26, %c5] : memref<8x8xi32, #tpu.memory_space<vmem>>, vector<8x1xi32>
    %37 = vector.broadcast %35 : vector<8x1xi32> to vector<8x128xi32>
    %38 = arith.cmpi eq, %6, %37 : vector<8x128xi32>
    %39 = vector.broadcast %36 : vector<8x1xi32> to vector<8x128xi32>
    %40 = arith.cmpi eq, %6, %39 : vector<8x128xi32>
    %41 = arith.ori %38, %40 : vector<8x128xi1>
    %42 = arith.extui %41 : vector<8x128xi1> to vector<8x128xi32>
    %43 = arith.sitofp %42 : vector<8x128xi32> to vector<8x128xf32>
    %44 = arith.truncf %43 : vector<8x128xf32> to vector<8x128xbf16>
    %c0_27 = arith.constant 0 : index
    %c0_28 = arith.constant 0 : index
    %45 = vector.load %arg4[%c0_27, %c0_28] : memref<8x128xf32, #tpu.memory_space<vmem>>, vector<8x128xf32>
    %c3 = arith.constant 3 : index
    %c0_29 = arith.constant 0 : index
    %c0_30 = arith.constant 0 : index
    %46 = vector.load %arg3[%c3, %c0_29, %c0_30] : memref<12x128x128xbf16, #tpu.memory_space<vmem>>, vector<1x128x128xbf16>
    %47 = vector.shape_cast %46 : vector<1x128x128xbf16> to vector<128x128xbf16>
    %cst_31 = arith.constant dense<0.000000e+00> : vector<8x128xf32>
    %48 = tpu.matmul %44, %47, %cst_31 {dimension_numbers = #tpu.dot_dimension_numbers<[1], [0], [0], [1], [0, 0, 1, 1], [], []>} : vector<8x128xbf16>, vector<128x128xbf16>, vector<8x128xf32> -> vector<8x128xf32>
    %49 = arith.addf %45, %48 : vector<8x128xf32>
    %c0_32 = arith.constant 0 : index
    %c0_33 = arith.constant 0 : index
    %50 = vector.load %arg4[%c0_32, %c0_33] : memref<8x128xf32, #tpu.memory_space<vmem>>, vector<8x128xf32>
    tpu.vector_store %arg4[%c0_32, %c0_33], %49 {strides = array<i32>} : memref<8x128xf32, #tpu.memory_space<vmem>>, vector<8x128xf32>,
    %c0_34 = arith.constant 0 : index
    %c0_35 = arith.constant 0 : index
    %51 = vector.load %arg4[%c0_34, %c0_35] : memref<8x128xf32, #tpu.memory_space<vmem>>, vector<8x128xf32>
    %c4_36 = arith.constant 4 : index
    %c0_37 = arith.constant 0 : index
    %c0_38 = arith.constant 0 : index
    %52 = vector.load %arg3[%c4_36, %c0_37, %c0_38] : memref<12x128x128xbf16, #tpu.memory_space<vmem>>, vector<1x128x128xbf16>
    %53 = vector.shape_cast %52 : vector<1x128x128xbf16> to vector<128x128xbf16>
    %cst_39 = arith.constant dense<0.000000e+00> : vector<8x128xf32>
    %54 = tpu.matmul %44, %53, %cst_39 {dimension_numbers = #tpu.dot_dimension_numbers<[1], [0], [0], [1], [0, 0, 1, 1], [], []>} : vector<8x128xbf16>, vector<128x128xbf16>, vector<8x128xf32> -> vector<8x128xf32>
    %55 = arith.addf %51, %54 : vector<8x128xf32>
    %c0_40 = arith.constant 0 : index
    %c0_41 = arith.constant 0 : index
    %56 = vector.load %arg4[%c0_40, %c0_41] : memref<8x128xf32, #tpu.memory_space<vmem>>, vector<8x128xf32>
    tpu.vector_store %arg4[%c0_40, %c0_41], %55 {strides = array<i32>} : memref<8x128xf32, #tpu.memory_space<vmem>>, vector<8x128xf32>,
    %c0_42 = arith.constant 0 : index
    %c0_43 = arith.constant 0 : index
    %57 = vector.load %arg4[%c0_42, %c0_43] : memref<8x128xf32, #tpu.memory_space<vmem>>, vector<8x128xf32>
    %c5_44 = arith.constant 5 : index
    %c0_45 = arith.constant 0 : index
    %c0_46 = arith.constant 0 : index
    %58 = vector.load %arg3[%c5_44, %c0_45, %c0_46] : memref<12x128x128xbf16, #tpu.memory_space<vmem>>, vector<1x128x128xbf16>
    %59 = vector.shape_cast %58 : vector<1x128x128xbf16> to vector<128x128xbf16>
    %cst_47 = arith.constant dense<0.000000e+00> : vector<8x128xf32>
    %60 = tpu.matmul %44, %59, %cst_47 {dimension_numbers = #tpu.dot_dimension_numbers<[1], [0], [0], [1], [0, 0, 1, 1], [], []>} : vector<8x128xbf16>, vector<128x128xbf16>, vector<8x128xf32> -> vector<8x128xf32>
    %61 = arith.addf %57, %60 : vector<8x128xf32>
    %c0_48 = arith.constant 0 : index
    %c0_49 = arith.constant 0 : index
    %62 = vector.load %arg4[%c0_48, %c0_49] : memref<8x128xf32, #tpu.memory_space<vmem>>, vector<8x128xf32>
    tpu.vector_store %arg4[%c0_48, %c0_49], %61 {strides = array<i32>} : memref<8x128xf32, #tpu.memory_space<vmem>>, vector<8x128xf32>,
    %c0_50 = arith.constant 0 : index
    %c2_51 = arith.constant 2 : index
    %63 = vector.load %arg2[%c0_50, %c2_51] : memref<8x8xi32, #tpu.memory_space<vmem>>, vector<8x1xi32>
    %c0_52 = arith.constant 0 : index
    %c6 = arith.constant 6 : index
    %64 = vector.load %arg2[%c0_52, %c6] : memref<8x8xi32, #tpu.memory_space<vmem>>, vector<8x1xi32>
    %65 = vector.broadcast %63 : vector<8x1xi32> to vector<8x128xi32>
    %66 = arith.cmpi eq, %6, %65 : vector<8x128xi32>
    %67 = vector.broadcast %64 : vector<8x1xi32> to vector<8x128xi32>
    %68 = arith.cmpi eq, %6, %67 : vector<8x128xi32>
    %69 = arith.ori %66, %68 : vector<8x128xi1>
    %70 = arith.extui %69 : vector<8x128xi1> to vector<8x128xi32>
    %71 = arith.sitofp %70 : vector<8x128xi32> to vector<8x128xf32>
    %72 = arith.truncf %71 : vector<8x128xf32> to vector<8x128xbf16>
    %c0_53 = arith.constant 0 : index
    %c0_54 = arith.constant 0 : index
    %73 = vector.load %arg4[%c0_53, %c0_54] : memref<8x128xf32, #tpu.memory_space<vmem>>, vector<8x128xf32>
    %c6_55 = arith.constant 6 : index
    %c0_56 = arith.constant 0 : index
    %c0_57 = arith.constant 0 : index
    %74 = vector.load %arg3[%c6_55, %c0_56, %c0_57] : memref<12x128x128xbf16, #tpu.memory_space<vmem>>, vector<1x128x128xbf16>
    %75 = vector.shape_cast %74 : vector<1x128x128xbf16> to vector<128x128xbf16>
    %cst_58 = arith.constant dense<0.000000e+00> : vector<8x128xf32>
    %76 = tpu.matmul %72, %75, %cst_58 {dimension_numbers = #tpu.dot_dimension_numbers<[1], [0], [0], [1], [0, 0, 1, 1], [], []>} : vector<8x128xbf16>, vector<128x128xbf16>, vector<8x128xf32> -> vector<8x128xf32>
    %77 = arith.addf %73, %76 : vector<8x128xf32>
    %c0_59 = arith.constant 0 : index
    %c0_60 = arith.constant 0 : index
    %78 = vector.load %arg4[%c0_59, %c0_60] : memref<8x128xf32, #tpu.memory_space<vmem>>, vector<8x128xf32>
    tpu.vector_store %arg4[%c0_59, %c0_60], %77 {strides = array<i32>} : memref<8x128xf32, #tpu.memory_space<vmem>>, vector<8x128xf32>,
    %c0_61 = arith.constant 0 : index
    %c0_62 = arith.constant 0 : index
    %79 = vector.load %arg4[%c0_61, %c0_62] : memref<8x128xf32, #tpu.memory_space<vmem>>, vector<8x128xf32>
    %c7 = arith.constant 7 : index
    %c0_63 = arith.constant 0 : index
    %c0_64 = arith.constant 0 : index
    %80 = vector.load %arg3[%c7, %c0_63, %c0_64] : memref<12x128x128xbf16, #tpu.memory_space<vmem>>, vector<1x128x128xbf16>
    %81 = vector.shape_cast %80 : vector<1x128x128xbf16> to vector<128x128xbf16>
    %cst_65 = arith.constant dense<0.000000e+00> : vector<8x128xf32>
    %82 = tpu.matmul %72, %81, %cst_65 {dimension_numbers = #tpu.dot_dimension_numbers<[1], [0], [0], [1], [0, 0, 1, 1], [], []>} : vector<8x128xbf16>, vector<128x128xbf16>, vector<8x128xf32> -> vector<8x128xf32>
    %83 = arith.addf %79, %82 : vector<8x128xf32>
    %c0_66 = arith.constant 0 : index
    %c0_67 = arith.constant 0 : index
    %84 = vector.load %arg4[%c0_66, %c0_67] : memref<8x128xf32, #tpu.memory_space<vmem>>, vector<8x128xf32>
    tpu.vector_store %arg4[%c0_66, %c0_67], %83 {strides = array<i32>} : memref<8x128xf32, #tpu.memory_space<vmem>>, vector<8x128xf32>,
    %c0_68 = arith.constant 0 : index
    %c0_69 = arith.constant 0 : index
    %85 = vector.load %arg4[%c0_68, %c0_69] : memref<8x128xf32, #tpu.memory_space<vmem>>, vector<8x128xf32>
    %c8 = arith.constant 8 : index
    %c0_70 = arith.constant 0 : index
    %c0_71 = arith.constant 0 : index
    %86 = vector.load %arg3[%c8, %c0_70, %c0_71] : memref<12x128x128xbf16, #tpu.memory_space<vmem>>, vector<1x128x128xbf16>
    %87 = vector.shape_cast %86 : vector<1x128x128xbf16> to vector<128x128xbf16>
    %cst_72 = arith.constant dense<0.000000e+00> : vector<8x128xf32>
    %88 = tpu.matmul %72, %87, %cst_72 {dimension_numbers = #tpu.dot_dimension_numbers<[1], [0], [0], [1], [0, 0, 1, 1], [], []>} : vector<8x128xbf16>, vector<128x128xbf16>, vector<8x128xf32> -> vector<8x128xf32>
    %89 = arith.addf %85, %88 : vector<8x128xf32>
    %c0_73 = arith.constant 0 : index
    %c0_74 = arith.constant 0 : index
    %90 = vector.load %arg4[%c0_73, %c0_74] : memref<8x128xf32, #tpu.memory_space<vmem>>, vector<8x128xf32>
    tpu.vector_store %arg4[%c0_73, %c0_74], %89 {strides = array<i32>} : memref<8x128xf32, #tpu.memory_space<vmem>>, vector<8x128xf32>,
    %c0_75 = arith.constant 0 : index
    %c3_76 = arith.constant 3 : index
    %91 = vector.load %arg2[%c0_75, %c3_76] : memref<8x8xi32, #tpu.memory_space<vmem>>, vector<8x1xi32>
    %c0_77 = arith.constant 0 : index
    %c7_78 = arith.constant 7 : index
    %92 = vector.load %arg2[%c0_77, %c7_78] : memref<8x8xi32, #tpu.memory_space<vmem>>, vector<8x1xi32>
    %93 = vector.broadcast %91 : vector<8x1xi32> to vector<8x128xi32>
    %94 = arith.cmpi eq, %6, %93 : vector<8x128xi32>
    %95 = vector.broadcast %92 : vector<8x1xi32> to vector<8x128xi32>
    %96 = arith.cmpi eq, %6, %95 : vector<8x128xi32>
    %97 = arith.ori %94, %96 : vector<8x128xi1>
    %98 = arith.extui %97 : vector<8x128xi1> to vector<8x128xi32>
    %99 = arith.sitofp %98 : vector<8x128xi32> to vector<8x128xf32>
    %100 = arith.truncf %99 : vector<8x128xf32> to vector<8x128xbf16>
    %c0_79 = arith.constant 0 : index
    %c0_80 = arith.constant 0 : index
    %101 = vector.load %arg4[%c0_79, %c0_80] : memref<8x128xf32, #tpu.memory_space<vmem>>, vector<8x128xf32>
    %c9 = arith.constant 9 : index
    %c0_81 = arith.constant 0 : index
    %c0_82 = arith.constant 0 : index
    %102 = vector.load %arg3[%c9, %c0_81, %c0_82] : memref<12x128x128xbf16, #tpu.memory_space<vmem>>, vector<1x128x128xbf16>
    %103 = vector.shape_cast %102 : vector<1x128x128xbf16> to vector<128x128xbf16>
    %cst_83 = arith.constant dense<0.000000e+00> : vector<8x128xf32>
    %104 = tpu.matmul %100, %103, %cst_83 {dimension_numbers = #tpu.dot_dimension_numbers<[1], [0], [0], [1], [0, 0, 1, 1], [], []>} : vector<8x128xbf16>, vector<128x128xbf16>, vector<8x128xf32> -> vector<8x128xf32>
    %105 = arith.addf %101, %104 : vector<8x128xf32>
    %c0_84 = arith.constant 0 : index
    %c0_85 = arith.constant 0 : index
    %106 = vector.load %arg4[%c0_84, %c0_85] : memref<8x128xf32, #tpu.memory_space<vmem>>, vector<8x128xf32>
    tpu.vector_store %arg4[%c0_84, %c0_85], %105 {strides = array<i32>} : memref<8x128xf32, #tpu.memory_space<vmem>>, vector<8x128xf32>,
    %c0_86 = arith.constant 0 : index
    %c0_87 = arith.constant 0 : index
    %107 = vector.load %arg4[%c0_86, %c0_87] : memref<8x128xf32, #tpu.memory_space<vmem>>, vector<8x128xf32>
    %c10 = arith.constant 10 : index
    %c0_88 = arith.constant 0 : index
    %c0_89 = arith.constant 0 : index
    %108 = vector.load %arg3[%c10, %c0_88, %c0_89] : memref<12x128x128xbf16, #tpu.memory_space<vmem>>, vector<1x128x128xbf16>
    %109 = vector.shape_cast %108 : vector<1x128x128xbf16> to vector<128x128xbf16>
    %cst_90 = arith.constant dense<0.000000e+00> : vector<8x128xf32>
    %110 = tpu.matmul %100, %109, %cst_90 {dimension_numbers = #tpu.dot_dimension_numbers<[1], [0], [0], [1], [0, 0, 1, 1], [], []>} : vector<8x128xbf16>, vector<128x128xbf16>, vector<8x128xf32> -> vector<8x128xf32>
    %111 = arith.addf %107, %110 : vector<8x128xf32>
    %c0_91 = arith.constant 0 : index
    %c0_92 = arith.constant 0 : index
    %112 = vector.load %arg4[%c0_91, %c0_92] : memref<8x128xf32, #tpu.memory_space<vmem>>, vector<8x128xf32>
    tpu.vector_store %arg4[%c0_91, %c0_92], %111 {strides = array<i32>} : memref<8x128xf32, #tpu.memory_space<vmem>>, vector<8x128xf32>,
    %c0_93 = arith.constant 0 : index
    %c0_94 = arith.constant 0 : index
    %113 = vector.load %arg4[%c0_93, %c0_94] : memref<8x128xf32, #tpu.memory_space<vmem>>, vector<8x128xf32>
    %c11 = arith.constant 11 : index
    %c0_95 = arith.constant 0 : index
    %c0_96 = arith.constant 0 : index
    %114 = vector.load %arg3[%c11, %c0_95, %c0_96] : memref<12x128x128xbf16, #tpu.memory_space<vmem>>, vector<1x128x128xbf16>
    %115 = vector.shape_cast %114 : vector<1x128x128xbf16> to vector<128x128xbf16>
    %cst_97 = arith.constant dense<0.000000e+00> : vector<8x128xf32>
    %116 = tpu.matmul %100, %115, %cst_97 {dimension_numbers = #tpu.dot_dimension_numbers<[1], [0], [0], [1], [0, 0, 1, 1], [], []>} : vector<8x128xbf16>, vector<128x128xbf16>, vector<8x128xf32> -> vector<8x128xf32>
    %117 = arith.addf %113, %116 : vector<8x128xf32>
    %c0_98 = arith.constant 0 : index
    %c0_99 = arith.constant 0 : index
    %118 = vector.load %arg4[%c0_98, %c0_99] : memref<8x128xf32, #tpu.memory_space<vmem>>, vector<8x128xf32>
    tpu.vector_store %arg4[%c0_98, %c0_99], %117 {strides = array<i32>} : memref<8x128xf32, #tpu.memory_space<vmem>>, vector<8x128xf32>,
    return
  }
  func.func @transform_0(%arg0: i32, %arg1: i32) -> (i32, i32) {
    %c0_i32 = arith.constant 0 : i32
    %c0_i32_0 = arith.constant 0 : i32
    return %arg0, %c0_i32 : i32, i32
  }
  func.func @transform_1(%arg0: i32, %arg1: i32) -> (i32, i32, i32) {
    %c0_i32 = arith.constant 0 : i32
    %c0_i32_0 = arith.constant 0 : i32
    %c0_i32_1 = arith.constant 0 : i32
    return %c0_i32, %arg1, %c0_i32_0 : i32, i32, i32
  }
  func.func @transform_2(%arg0: i32, %arg1: i32) -> (i32, i32) {
    %c0_i32 = arith.constant 0 : i32
    %c0_i32_0 = arith.constant 0 : i32
    return %arg0, %c0_i32 : i32, i32
  }
}

</mosaic_0001>

<llo_original>
// kernel: tpu_custom_call.1
$region0: #{tpu_custom_call.1}
  #allocation0 [shape = 'u32[]', space=smem, size = 0x4, offset = 0x4, fixed_abs, tag = 'smem constant byte address 0x4 - core index']
  #allocation1 [shape = 'u32[72,128]{1,0:T(1,128)}', space=vmem, size = 0x9000, scoped, tag = 'internal scratch']
  %s0 = inlined_call_operand.vmem [shape: s32[16,8], index: 0, kind: input, shape index: {}]
  %s1 = inlined_call_operand.hbm [shape: bf16[12,128,128], index: 1, kind: input, shape index: {}]
  %s2 = inlined_call_operand.hbm [shape: f32[16,128], index: 2, kind: output, shape index: {}]
  %s3 = sld [smem:[#allocation0]]
  $region49: #{tpu_custom_call.1} parent=0
    _
  %s5 = ssub.s32 1, %s3
  %s6 = scalar_select 0, %s5, %s3
  $region1: #{tpu_custom_call.1} parent=0
    #allocation2 [shape = 'u8[393216]{0}', space=vmem, size = 0x60000, scoped, tag = 'input window, operand 1, single buffered']
    #allocation3 [shape = 's32[2]{0}', space=sflag, size = 0x8, scoped, tag = 'scoped memory for tpu_custom_call.1']
    #allocation4 [shape = 's32[2]{0}', space=sflag, size = 0x8, scoped, tag = 'scoped memory for tpu_custom_call.1']
    #allocation5 [shape = 'u8[8192]{0}', space=vmem, size = 0x2000, scoped, tag = 'output window, operand 0']
    %7 = vsyncpa [#allocation3], 0
    %8 = vsyncpa [#allocation4], 0
    %s9 = scalar_lea.sflag [#allocation4], 1
    %10 = vsyncpa %s9, 0
    loop: start=0, step=1, limit=4
    $region2: #{tpu_custom_call.1} parent=1 // loop_pre_header
      _
    $region3: #{tpu_custom_call.1} parent=1 // loop_header
      %s12 = sphi 0, %s16
      %p13 = scmp.ge.s32.totalorder %s12, 4
      %s19 = sphi 0, %s31
      %s20 = sphi 0, %s27
      %s21 = sphi 0, %s19
      %s22 = sphi 0, %s20
      %s23 = sphi 0, %s21
      %s24 = sphi 0, %s22
      %s34 = sphi 0, %s36
      %s37 = sphi 0, %s34
      %s38 = sphi 0, %s37
      %s54 = sphi 0, %s38
      %s60 = sphi 0, %s62
      %s63 = sphi 0, %s60
      %s64 = sphi 0, %s63
      %s80 = sphi 0, %s64
      %s86 = sphi 0, %s88
      %s89 = sphi 0, %s86
      %s90 = sphi 0, %s89
      %s106 = sphi 0, %s90
    $region4: #{tpu_custom_call.1} parent=1 // loop_header_branch
      %15 = sbr.rel (%p13) target = $region8
    $region5: #{tpu_custom_call.1} parent=1 // loop_body
      %s17 = ssub.s32 %s12, 1
      %s18 = ssub.s32 %s12, 2
      %s25 = sadd.s32 1, %s20
      %p26 = scmp.ge.s32.totalorder %s25, 1
      %s27 = scalar_select %p26, 0, %s25
      %s28 = sadd.s32 1, %s19
      %s29 = scalar_select %p26, %s28, %s19
      %p30 = scmp.ge.s32.totalorder %s29, 2
      %s31 = scalar_select %p30, 0, %s29
      %s32 = ssub.s32 %s19, %s31
      %p33 = scmp.eq.s32.totalorder %s32, 0
      %s35 = sadd.s32 %s34, 1
      %s36 = scalar_select %p33, %s34, %s35
      %p39 = pneg %p33
      %p40 = scmp.eq.s32.totalorder %s12, 1
      %p41 = por %p39, %p40
      %p42 = scmp.ne.s32.totalorder %s34, %s37
      %p43 = scmp.eq.s32.totalorder %s12, 0
      %p44 = por %p42, %p43
      %p45 = scmp.ne.s32.totalorder %s34, %s37
      %p46 = scmp.eq.s32.totalorder %s17, 1
      %p47 = por %p45, %p46
      %p48 = scmp.ne.s32.totalorder %s37, %s38
      %p49 = scmp.eq.s32.totalorder %s17, 0
      %p50 = por %p48, %p49
      %p51 = scmp.ne.s32.totalorder %s37, %s38
      %p52 = scmp.eq.s32.totalorder %s18, 1
      %p53 = por %p51, %p52
      %p55 = scmp.ne.s32.totalorder %s38, %s54
      %p56 = scmp.eq.s32.totalorder %s18, 0
      %p57 = por %p55, %p56
      %s58 = ssub.s32 %s20, %s27
      %p59 = scmp.eq.s32.totalorder %s58, 0
      %s61 = sadd.s32 %s60, 1
      %s62 = scalar_select %p59, %s60, %s61
      %p65 = pneg %p59
      %p66 = scmp.eq.s32.totalorder %s12, 1
      %p67 = por %p65, %p66
      %p68 = scmp.ne.s32.totalorder %s60, %s63
      %p69 = scmp.eq.s32.totalorder %s12, 0
      %p70 = por %p68, %p69
      %p71 = scmp.ne.s32.totalorder %s60, %s63
      %p72 = scmp.eq.s32.totalorder %s17, 1
      %p73 = por %p71, %p72
      %p74 = scmp.ne.s32.totalorder %s63, %s64
      %p75 = scmp.eq.s32.totalorder %s17, 0
      %p76 = por %p74, %p75
      %p77 = scmp.ne.s32.totalorder %s63, %s64
      %p78 = scmp.eq.s32.totalorder %s18, 1
      %p79 = por %p77, %p78
      %p81 = scmp.ne.s32.totalorder %s64, %s80
      %p82 = scmp.eq.s32.totalorder %s18, 0
      %p83 = por %p81, %p82
      %s84 = ssub.s32 %s19, %s31
      %p85 = scmp.eq.s32.totalorder %s84, 0
      %s87 = sadd.s32 %s86, 1
      %s88 = scalar_select %p85, %s86, %s87
      %p91 = pneg %p85
      %p92 = scmp.eq.s32.totalorder %s12, 1
      %p93 = por %p91, %p92
      %p94 = scmp.ne.s32.totalorder %s86, %s89
      %p95 = scmp.eq.s32.totalorder %s12, 0
      %p96 = por %p94, %p95
      %p97 = scmp.ne.s32.totalorder %s86, %s89
      %p98 = scmp.eq.s32.totalorder %s17, 1
      %p99 = por %p97, %p98
      %p100 = scmp.ne.s32.totalorder %s89, %s90
      %p101 = scmp.eq.s32.totalorder %s17, 0
      %p102 = por %p100, %p101
      %p103 = scmp.ne.s32.totalorder %s89, %s90
      %p104 = scmp.eq.s32.totalorder %s18, 1
      %p105 = por %p103, %p104
      %p107 = scmp.ne.s32.totalorder %s90, %s106
      %p108 = scmp.eq.s32.totalorder %s18, 0
      %p109 = por %p107, %p108
      %p110 = scmp.le.s32.totalorder 1, %s12
      %p111 = scmp.lt.s32.totalorder %s12, 3
      %p112 = pnand %p110, %p111
      %p113 = pneg %p112
      // Predicated region
      $region9: #{tpu_custom_call.1} parent=5 // pred_check
        _
      $region10: #{tpu_custom_call.1} parent=5 // pred_check_branch
        %115 = sbr.rel (%p112) target = $region12
      $region11: #{tpu_custom_call.1} parent=5 // pred_region
        %s116 = ssub.s32 %s12, 1
        // Predicated region
        $region13: #{tpu_custom_call.1} parent=11 // pred_check
          %p117 = pneg %p76
        $region14: #{tpu_custom_call.1} parent=11 // pred_check_branch
          %119 = sbr.rel (%p117) target = $region16
        $region15: #{tpu_custom_call.1} parent=11 // pred_region
          %s120 = smul.u32 16, %s22
          %122 = vsyncadd [#allocation3], 0
          %s123 = smul.addr %s120, 4
          %s124 = scalar_lea.hbm %s1, %s123
          %s125 = sshll.u32 %s124, 4
          %s126 = int_to_ptr.hbm [resolvable:$true] %s125
          %s127 = sshll.u32 [#allocation2], 4
          %s128 = int_to_ptr.vmem [resolvable:$true] %s127
          %133 = dma.hbm_to_vmem [thread:$0]  %s126, 12288, %s128, [#allocation3], 64, 64, 4
        $region16: #{tpu_custom_call.1} parent=11 // pred_fallthru
          _
      $region12: #{tpu_custom_call.1} parent=5 // pred_fallthru
        _
      %p134 = scmp.lt.s32.totalorder %s12, 2
      // Predicated region
      $region17: #{tpu_custom_call.1} parent=5 // pred_check
        %p135 = pneg %p134
      $region18: #{tpu_custom_call.1} parent=5 // pred_check_branch
        %137 = sbr.rel (%p135) target = $region20
      $region19: #{tpu_custom_call.1} parent=5 // pred_region
        // Predicated region
        $region21: #{tpu_custom_call.1} parent=19 // pred_check
          %p138 = pneg %p44
        $region22: #{tpu_custom_call.1} parent=19 // pred_check_branch
          %140 = sbr.rel (%p138) target = $region24
        $region23: #{tpu_custom_call.1} parent=19 // pred_region
          %p141 = scmp.lt.s32.totalorder %s19, 1
          %s142 = scalar_select %p141, %s19, 1
          %s143 = smul.addr %s142, 8
          %s144 = scalar_lea.vmem %s0, %s143
        $region24: #{tpu_custom_call.1} parent=19 // pred_fallthru
          _
      $region20: #{tpu_custom_call.1} parent=5 // pred_fallthru
        _
      %p145 = scmp.le.s32.totalorder 1, %s12
      %p146 = scmp.lt.s32.totalorder %s12, 3
      %p147 = pnand %p145, %p146
      %p148 = pneg %p147
      // Predicated region
      $region25: #{tpu_custom_call.1} parent=5 // pred_check
        _
      $region26: #{tpu_custom_call.1} parent=5 // pred_check_branch
        %150 = sbr.rel (%p147) target = $region28
      $region27: #{tpu_custom_call.1} parent=5 // pred_region
        %s151 = ssub.s32 %s12, 1
        // Predicated region
        $region29: #{tpu_custom_call.1} parent=27 // pred_check
          %p152 = pneg %p76
        $region30: #{tpu_custom_call.1} parent=27 // pred_check_branch
          %154 = sbr.rel (%p152) target = $region32
        $region31: #{tpu_custom_call.1} parent=27 // pred_region
          %156 = dma.done [#allocation3], 12288
        $region32: #{tpu_custom_call.1} parent=27 // pred_fallthru
          _
        %p157 = scmp.lt.s32.totalorder %s21, 1
        %s158 = scalar_select %p157, %s21, 1
        %s159 = smul.addr %s158, 8
        %s160 = scalar_lea.vmem %s0, %s159
        %p161 = pneg %p50
        %p162 = pneg %p47
        %p163 = pneg %p76
        %p164 = pneg %p73
        %p165 = pneg %p102
        %p166 = pneg %p99
        %s167 = sand.u32 %s89, 1
        %s168 = scalar_lea.sflag [#allocation4], %s167
        %s169 = sand.u32 %s89, 1
        %s170 = smul.addr %s169, 8
        %s171 = scalar_lea.vmem [#allocation5], %s170
        %p172 = scmp.lt.s32.totalorder %s21, 1
        %s173 = scalar_select %p172, %s21, 1
        %s174 = smul.addr %s173, 8
        %s175 = scalar_lea.vmem %s0, %s174
        %s176 = smul.u32 16, %s22
        %s177 = smul.u32 %s22, 128
        %p178 = scmp.eq.s32.totalorder %s22, 0
        // Predicated region
        $region33: #{tpu_custom_call.1} parent=27 // pred_check
          %p179 = pneg %p178
        $region34: #{tpu_custom_call.1} parent=27 // pred_check_branch
          %181 = sbr.rel (%p179) target = $region36
        $region35: #{tpu_custom_call.1} parent=27 // pred_region
          %182 = vst [vmem:[%s171] sm:$0xff] 0.0
        $region36: #{tpu_custom_call.1} parent=27 // pred_fallthru
          _
        %v183 = vlaneseq
        %v184 = vand.u32 %v183, 127
        %v185 = vstv %s177
        %v186 = vadd.s32 %v185, %v184
        %v187 = vld [vmem:[%s175] sm:$0xff]
        %188 = vset.pattern.permute.xlu0 0
        %189 = vperm.xlu0 %188, %v187
        %v190 = vpop.permute.xlu0 %189
        %vm191 = vcmp.eq.s32.totalorder %v186, %v190
        %192 = vset.pattern.permute.xlu0 4
        %193 = vperm.xlu0 %192, %v187
        %v194 = vpop.permute.xlu0 %193
        %vm195 = vcmp.eq.s32.totalorder %v186, %v194
        %vm196 = vmor %vm191, %vm195
        %v197 = vsel %vm196, 1, 0
        %v198 = vcvt.s32.f32 %v197
        %v199 = vpack.c.bf16 %v198, %v198
        %v200 = vld [vmem:[%s171] sm:$0xff]
        %v201 = vld [vmem:[#allocation2] sm:$0xf]
        %v202 = vld [vmem:[#allocation2 + $0x4] sm:$0xf]
        %v203 = vld [vmem:[#allocation2 + $0x8] sm:$0xf]
        %v204 = vld [vmem:[#allocation2 + $0xc] sm:$0xf]
        %v205 = vld [vmem:[#allocation2 + $0x10] sm:$0xf]
        %v206 = vld [vmem:[#allocation2 + $0x14] sm:$0xf]
        %v207 = vld [vmem:[#allocation2 + $0x18] sm:$0xf]
        %v208 = vld [vmem:[#allocation2 + $0x1c] sm:$0xf]
        %v209 = vld [vmem:[#allocation2 + $0x20] sm:$0xf]
        %v210 = vld [vmem:[#allocation2 + $0x24] sm:$0xf]
        %v211 = vld [vmem:[#allocation2 + $0x28] sm:$0xf]
        %v212 = vld [vmem:[#allocation2 + $0x2c] sm:$0xf]
        %v213 = vld [vmem:[#allocation2 + $0x30] sm:$0xf]
        %v214 = vld [vmem:[#allocation2 + $0x34] sm:$0xf]
        %v215 = vld [vmem:[#allocation2 + $0x38] sm:$0xf]
        %v216 = vld [vmem:[#allocation2 + $0x3c] sm:$0xf]
        %v233 = vunpack.c.l.b16 %v201
        %v234 = vunpack.c.l.b16 %v202
        %v235 = vunpack.c.l.b16 %v203
        %v236 = vunpack.c.l.b16 %v204
        %v237 = vunpack.c.l.b16 %v205
        %v238 = vunpack.c.l.b16 %v206
        %v239 = vunpack.c.l.b16 %v207
        %v240 = vunpack.c.l.b16 %v208
        %v241 = vunpack.c.l.b16 %v209
        %v242 = vunpack.c.l.b16 %v210
        %v243 = vunpack.c.l.b16 %v211
        %v244 = vunpack.c.l.b16 %v212
        %v245 = vunpack.c.l.b16 %v213
        %v246 = vunpack.c.l.b16 %v214
        %v247 = vunpack.c.l.b16 %v215
        %v248 = vunpack.c.l.b16 %v216
        %v249 = vpack.c.b16 %v234, %v233
        %v250 = vpack.c.b16 %v236, %v235
        %v251 = vpack.c.b16 %v238, %v237
        %v252 = vpack.c.b16 %v240, %v239
        %v253 = vpack.c.b16 %v242, %v241
        %v254 = vpack.c.b16 %v244, %v243
        %v255 = vpack.c.b16 %v246, %v245
        %v256 = vpack.c.b16 %v248, %v247
        %265 = vmatpush.bf16.msra.mxu0 %v256
        %266 = vmatpush.bf16.msra.mxu0 %v255
        %267 = vmatpush.bf16.msra.mxu0 %v254
        %268 = vmatpush.bf16.msra.mxu0 %v253
        %269 = vmatpush.bf16.msra.mxu0 %v252
        %270 = vmatpush.bf16.msra.mxu0 %v251
        %271 = vmatpush.bf16.msra.mxu0 %v250
        %272 = vmatpush.bf16.msra.mxu0 %v249
        %273 = vmatmul.bf16.gmra.mxu0 %v199
        %v274 = vpop.f32.mrf.mxu0
        %v275 = vadd.f32 0.0, %v274
        %v276 = vpop.f32.mrf.mxu0
        %277 = vdwg.mxu0
        %v278 = vadd.f32 %v200, %v275
        %279 = vst [vmem:[%s171] sm:$0xff] %v278
        %v280 = vld [vmem:[%s171] sm:$0xff]
        %s281 = scalar_lea.vmem [#allocation2], 64
        %v282 = vld [vmem:[%s281] sm:$0xf]
        %v283 = vld [vmem:[%s281 + $0x4] sm:$0xf]
        %v284 = vld [vmem:[%s281 + $0x8] sm:$0xf]
        %v285 = vld [vmem:[%s281 + $0xc] sm:$0xf]
        %v286 = vld [vmem:[%s281 + $0x10] sm:$0xf]
        %v287 = vld [vmem:[%s281 + $0x14] sm:$0xf]
        %v288 = vld [vmem:[%s281 + $0x18] sm:$0xf]
        %v289 = vld [vmem:[%s281 + $0x1c] sm:$0xf]
        %v290 = vld [vmem:[%s281 + $0x20] sm:$0xf]
        %v291 = vld [vmem:[%s281 + $0x24] sm:$0xf]
        %v292 = vld [vmem:[%s281 + $0x28] sm:$0xf]
        %v293 = vld [vmem:[%s281 + $0x2c] sm:$0xf]
        %v294 = vld [vmem:[%s281 + $0x30] sm:$0xf]
        %v295 = vld [vmem:[%s281 + $0x34] sm:$0xf]
        %v296 = vld [vmem:[%s281 + $0x38] sm:$0xf]
        %v297 = vld [vmem:[%s281 + $0x3c] sm:$0xf]
        %v314 = vunpack.c.l.b16 %v282
        %v315 = vunpack.c.l.b16 %v283
        %v316 = vunpack.c.l.b16 %v284
        %v317 = vunpack.c.l.b16 %v285
        %v318 = vunpack.c.l.b16 %v286
        %v319 = vunpack.c.l.b16 %v287
        %v320 = vunpack.c.l.b16 %v288
        %v321 = vunpack.c.l.b16 %v289
        %v322 = vunpack.c.l.b16 %v290
        %v323 = vunpack.c.l.b16 %v291
        %v324 = vunpack.c.l.b16 %v292
        %v325 = vunpack.c.l.b16 %v293
        %v326 = vunpack.c.l.b16 %v294
        %v327 = vunpack.c.l.b16 %v295
        %v328 = vunpack.c.l.b16 %v296
        %v329 = vunpack.c.l.b16 %v297
        %v330 = vpack.c.b16 %v315, %v314
        %v331 = vpack.c.b16 %v317, %v316
        %v332 = vpack.c.b16 %v319, %v318
        %v333 = vpack.c.b16 %v321, %v320
        %v334 = vpack.c.b16 %v323, %v322
        %v335 = vpack.c.b16 %v325, %v324
        %v336 = vpack.c.b16 %v327, %v326
        %v337 = vpack.c.b16 %v329, %v328
        %346 = vmatpush.bf16.msra.mxu0 %v337
        %347 = vmatpush.bf16.msra.mxu0 %v336
        %348 = vmatpush.bf16.msra.mxu0 %v335
        %349 = vmatpush.bf16.msra.mxu0 %v334
        %350 = vmatpush.bf16.msra.mxu0 %v333
        %351 = vmatpush.bf16.msra.mxu0 %v332
        %352 = vmatpush.bf16.msra.mxu0 %v331
        %353 = vmatpush.bf16.msra.mxu0 %v330
        %354 = vmatmul.bf16.gmra.mxu0 %v199
        %v355 = vpop.f32.mrf.mxu0
        %v356 = vadd.f32 0.0, %v355
        %v357 = vpop.f32.mrf.mxu0
        %358 = vdwg.mxu0
        %v359 = vadd.f32 %v280, %v356
        %360 = vst [vmem:[%s171] sm:$0xff] %v359
        %v361 = vld [vmem:[%s171] sm:$0xff]
        %s362 = scalar_lea.vmem [#allocation2], 128
        %v363 = vld [vmem:[%s362] sm:$0xf]
        %v364 = vld [vmem:[%s362 + $0x4] sm:$0xf]
        %v365 = vld [vmem:[%s362 + $0x8] sm:$0xf]
        %v366 = vld [vmem:[%s362 + $0xc] sm:$0xf]
        %v367 = vld [vmem:[%s362 + $0x10] sm:$0xf]
        %v368 = vld [vmem:[%s362 + $0x14] sm:$0xf]
        %v369 = vld [vmem:[%s362 + $0x18] sm:$0xf]
        %v370 = vld [vmem:[%s362 + $0x1c] sm:$0xf]
        %v371 = vld [vmem:[%s362 + $0x20] sm:$0xf]
        %v372 = vld [vmem:[%s362 + $0x24] sm:$0xf]
        %v373 = vld [vmem:[%s362 + $0x28] sm:$0xf]
        %v374 = vld [vmem:[%s362 + $0x2c] sm:$0xf]
        %v375 = vld [vmem:[%s362 + $0x30] sm:$0xf]
        %v376 = vld [vmem:[%s362 + $0x34] sm:$0xf]
        %v377 = vld [vmem:[%s362 + $0x38] sm:$0xf]
        %v378 = vld [vmem:[%s362 + $0x3c] sm:$0xf]
        %v395 = vunpack.c.l.b16 %v363
        %v396 = vunpack.c.l.b16 %v364
        %v397 = vunpack.c.l.b16 %v365
        %v398 = vunpack.c.l.b16 %v366
        %v399 = vunpack.c.l.b16 %v367
        %v400 = vunpack.c.l.b16 %v368
        %v401 = vunpack.c.l.b16 %v369
        %v402 = vunpack.c.l.b16 %v370
        %v403 = vunpack.c.l.b16 %v371
        %v404 = vunpack.c.l.b16 %v372
        %v405 = vunpack.c.l.b16 %v373
        %v406 = vunpack.c.l.b16 %v374
        %v407 = vunpack.c.l.b16 %v375
        %v408 = vunpack.c.l.b16 %v376
        %v409 = vunpack.c.l.b16 %v377
        %v410 = vunpack.c.l.b16 %v378
        %v411 = vpack.c.b16 %v396, %v395
        %v412 = vpack.c.b16 %v398, %v397
        %v413 = vpack.c.b16 %v400, %v399
        %v414 = vpack.c.b16 %v402, %v401
        %v415 = vpack.c.b16 %v404, %v403
        %v416 = vpack.c.b16 %v406, %v405
        %v417 = vpack.c.b16 %v408, %v407
        %v418 = vpack.c.b16 %v410, %v409
        %427 = vmatpush.bf16.msra.mxu0 %v418
        %428 = vmatpush.bf16.msra.mxu0 %v417
        %429 = vmatpush.bf16.msra.mxu0 %v416
        %430 = vmatpush.bf16.msra.mxu0 %v415
        %431 = vmatpush.bf16.msra.mxu0 %v414
        %432 = vmatpush.bf16.msra.mxu0 %v413
        %433 = vmatpush.bf16.msra.mxu0 %v412
        %434 = vmatpush.bf16.msra.mxu0 %v411
        %435 = vmatmul.bf16.gmra.mxu0 %v199
        %v436 = vpop.f32.mrf.mxu0
        %v437 = vadd.f32 0.0, %v436
        %v438 = vpop.f32.mrf.mxu0
        %439 = vdwg.mxu0
        %v440 = vadd.f32 %v361, %v437
        %441 = vst [vmem:[%s171] sm:$0xff] %v440
        %v442 = vld [vmem:[%s175] sm:$0xff]
        %443 = vset.pattern.permute.xlu0 1
        %444 = vperm.xlu0 %443, %v442
        %v445 = vpop.permute.xlu0 %444
        %vm446 = vcmp.eq.s32.totalorder %v186, %v445
        %447 = vset.pattern.permute.xlu0 5
        %448 = vperm.xlu0 %447, %v442
        %v449 = vpop.permute.xlu0 %448
        %vm450 = vcmp.eq.s32.totalorder %v186, %v449
        %vm451 = vmor %vm446, %vm450
        %v452 = vsel %vm451, 1, 0
        %v453 = vcvt.s32.f32 %v452
        %v454 = vpack.c.bf16 %v453, %v453
        %v455 = vld [vmem:[%s171] sm:$0xff]
        %s456 = scalar_lea.vmem [#allocation2], 192
        %v457 = vld [vmem:[%s456] sm:$0xf]
        %v458 = vld [vmem:[%s456 + $0x4] sm:$0xf]
        %v459 = vld [vmem:[%s456 + $0x8] sm:$0xf]
        %v460 = vld [vmem:[%s456 + $0xc] sm:$0xf]
        %v461 = vld [vmem:[%s456 + $0x10] sm:$0xf]
        %v462 = vld [vmem:[%s456 + $0x14] sm:$0xf]
        %v463 = vld [vmem:[%s456 + $0x18] sm:$0xf]
        %v464 = vld [vmem:[%s456 + $0x1c] sm:$0xf]
        %v465 = vld [vmem:[%s456 + $0x20] sm:$0xf]
        %v466 = vld [vmem:[%s456 + $0x24] sm:$0xf]
        %v467 = vld [vmem:[%s456 + $0x28] sm:$0xf]
        %v468 = vld [vmem:[%s456 + $0x2c] sm:$0xf]
        %v469 = vld [vmem:[%s456 + $0x30] sm:$0xf]
        %v470 = vld [vmem:[%s456 + $0x34] sm:$0xf]
        %v471 = vld [vmem:[%s456 + $0x38] sm:$0xf]
        %v472 = vld [vmem:[%s456 + $0x3c] sm:$0xf]
        %v489 = vunpack.c.l.b16 %v457
        %v490 = vunpack.c.l.b16 %v458
        %v491 = vunpack.c.l.b16 %v459
        %v492 = vunpack.c.l.b16 %v460
        %v493 = vunpack.c.l.b16 %v461
        %v494 = vunpack.c.l.b16 %v462
        %v495 = vunpack.c.l.b16 %v463
        %v496 = vunpack.c.l.b16 %v464
        %v497 = vunpack.c.l.b16 %v465
        %v498 = vunpack.c.l.b16 %v466
        %v499 = vunpack.c.l.b16 %v467
        %v500 = vunpack.c.l.b16 %v468
        %v501 = vunpack.c.l.b16 %v469
        %v502 = vunpack.c.l.b16 %v470
        %v503 = vunpack.c.l.b16 %v471
        %v504 = vunpack.c.l.b16 %v472
        %v505 = vpack.c.b16 %v490, %v489
        %v506 = vpack.c.b16 %v492, %v491
        %v507 = vpack.c.b16 %v494, %v493
        %v508 = vpack.c.b16 %v496, %v495
        %v509 = vpack.c.b16 %v498, %v497
        %v510 = vpack.c.b16 %v500, %v499
        %v511 = vpack.c.b16 %v502, %v501
        %v512 = vpack.c.b16 %v504, %v503
        %521 = vmatpush.bf16.msra.mxu0 %v512
        %522 = vmatpush.bf16.msra.mxu0 %v511
        %523 = vmatpush.bf16.msra.mxu0 %v510
        %524 = vmatpush.bf16.msra.mxu0 %v509
        %525 = vmatpush.bf16.msra.mxu0 %v508
        %526 = vmatpush.bf16.msra.mxu0 %v507
        %527 = vmatpush.bf16.msra.mxu0 %v506
        %528 = vmatpush.bf16.msra.mxu0 %v505
        %529 = vmatmul.bf16.gmra.mxu0 %v454
        %v530 = vpop.f32.mrf.mxu0
        %v531 = vadd.f32 0.0, %v530
        %v532 = vpop.f32.mrf.mxu0
        %533 = vdwg.mxu0
        %v534 = vadd.f32 %v455, %v531
        %535 = vst [vmem:[%s171] sm:$0xff] %v534
        %v536 = vld [vmem:[%s171] sm:$0xff]
        %s537 = scalar_lea.vmem [#allocation2], 256
        %v538 = vld [vmem:[%s537] sm:$0xf]
        %v539 = vld [vmem:[%s537 + $0x4] sm:$0xf]
        %v540 = vld [vmem:[%s537 + $0x8] sm:$0xf]
        %v541 = vld [vmem:[%s537 + $0xc] sm:$0xf]
        %v542 = vld [vmem:[%s537 + $0x10] sm:$0xf]
        %v543 = vld [vmem:[%s537 + $0x14] sm:$0xf]
        %v544 = vld [vmem:[%s537 + $0x18] sm:$0xf]
        %v545 = vld [vmem:[%s537 + $0x1c] sm:$0xf]
        %v546 = vld [vmem:[%s537 + $0x20] sm:$0xf]
        %v547 = vld [vmem:[%s537 + $0x24] sm:$0xf]
        %v548 = vld [vmem:[%s537 + $0x28] sm:$0xf]
        %v549 = vld [vmem:[%s537 + $0x2c] sm:$0xf]
        %v550 = vld [vmem:[%s537 + $0x30] sm:$0xf]
        %v551 = vld [vmem:[%s537 + $0x34] sm:$0xf]
        %v552 = vld [vmem:[%s537 + $0x38] sm:$0xf]
        %v553 = vld [vmem:[%s537 + $0x3c] sm:$0xf]
        %v570 = vunpack.c.l.b16 %v538
        %v571 = vunpack.c.l.b16 %v539
        %v572 = vunpack.c.l.b16 %v540
        %v573 = vunpack.c.l.b16 %v541
        %v574 = vunpack.c.l.b16 %v542
        %v575 = vunpack.c.l.b16 %v543
        %v576 = vunpack.c.l.b16 %v544
        %v577 = vunpack.c.l.b16 %v545
        %v578 = vunpack.c.l.b16 %v546
        %v579 = vunpack.c.l.b16 %v547
        %v580 = vunpack.c.l.b16 %v548
        %v581 = vunpack.c.l.b16 %v549
        %v582 = vunpack.c.l.b16 %v550
        %v583 = vunpack.c.l.b16 %v551
        %v584 = vunpack.c.l.b16 %v552
        %v585 = vunpack.c.l.b16 %v553
        %v586 = vpack.c.b16 %v571, %v570
        %v587 = vpack.c.b16 %v573, %v572
        %v588 = vpack.c.b16 %v575, %v574
        %v589 = vpack.c.b16 %v577, %v576
        %v590 = vpack.c.b16 %v579, %v578
        %v591 = vpack.c.b16 %v581, %v580
        %v592 = vpack.c.b16 %v583, %v582
        %v593 = vpack.c.b16 %v585, %v584
        %602 = vmatpush.bf16.msra.mxu0 %v593
        %603 = vmatpush.bf16.msra.mxu0 %v592
        %604 = vmatpush.bf16.msra.mxu0 %v591
        %605 = vmatpush.bf16.msra.mxu0 %v590
        %606 = vmatpush.bf16.msra.mxu0 %v589
        %607 = vmatpush.bf16.msra.mxu0 %v588
        %608 = vmatpush.bf16.msra.mxu0 %v587
        %609 = vmatpush.bf16.msra.mxu0 %v586
        %610 = vmatmul.bf16.gmra.mxu0 %v454
        %v611 = vpop.f32.mrf.mxu0
        %v612 = vadd.f32 0.0, %v611
        %v613 = vpop.f32.mrf.mxu0
        %614 = vdwg.mxu0
        %v615 = vadd.f32 %v536, %v612
        %616 = vst [vmem:[%s171] sm:$0xff] %v615
        %v617 = vld [vmem:[%s171] sm:$0xff]
        %s618 = scalar_lea.vmem [#allocation2], 320
        %v619 = vld [vmem:[%s618] sm:$0xf]
        %v620 = vld [vmem:[%s618 + $0x4] sm:$0xf]
        %v621 = vld [vmem:[%s618 + $0x8] sm:$0xf]
        %v622 = vld [vmem:[%s618 + $0xc] sm:$0xf]
        %v623 = vld [vmem:[%s618 + $0x10] sm:$0xf]
        %v624 = vld [vmem:[%s618 + $0x14] sm:$0xf]
        %v625 = vld [vmem:[%s618 + $0x18] sm:$0xf]
        %v626 = vld [vmem:[%s618 + $0x1c] sm:$0xf]
        %v627 = vld [vmem:[%s618 + $0x20] sm:$0xf]
        %v628 = vld [vmem:[%s618 + $0x24] sm:$0xf]
        %v629 = vld [vmem:[%s618 + $0x28] sm:$0xf]
        %v630 = vld [vmem:[%s618 + $0x2c] sm:$0xf]
        %v631 = vld [vmem:[%s618 + $0x30] sm:$0xf]
        %v632 = vld [vmem:[%s618 + $0x34] sm:$0xf]
        %v633 = vld [vmem:[%s618 + $0x38] sm:$0xf]
        %v634 = vld [vmem:[%s618 + $0x3c] sm:$0xf]
        %v651 = vunpack.c.l.b16 %v619
        %v652 = vunpack.c.l.b16 %v620
        %v653 = vunpack.c.l.b16 %v621
        %v654 = vunpack.c.l.b16 %v622
        %v655 = vunpack.c.l.b16 %v623
        %v656 = vunpack.c.l.b16 %v624
        %v657 = vunpack.c.l.b16 %v625
        %v658 = vunpack.c.l.b16 %v626
        %v659 = vunpack.c.l.b16 %v627
        %v660 = vunpack.c.l.b16 %v628
        %v661 = vunpack.c.l.b16 %v629
        %v662 = vunpack.c.l.b16 %v630
        %v663 = vunpack.c.l.b16 %v631
        %v664 = vunpack.c.l.b16 %v632
        %v665 = vunpack.c.l.b16 %v633
        %v666 = vunpack.c.l.b16 %v634
        %v667 = vpack.c.b16 %v652, %v651
        %v668 = vpack.c.b16 %v654, %v653
        %v669 = vpack.c.b16 %v656, %v655
        %v670 = vpack.c.b16 %v658, %v657
        %v671 = vpack.c.b16 %v660, %v659
        %v672 = vpack.c.b16 %v662, %v661
        %v673 = vpack.c.b16 %v664, %v663
        %v674 = vpack.c.b16 %v666, %v665
        %683 = vmatpush.bf16.msra.mxu0 %v674
        %684 = vmatpush.bf16.msra.mxu0 %v673
        %685 = vmatpush.bf16.msra.mxu0 %v672
        %686 = vmatpush.bf16.msra.mxu0 %v671
        %687 = vmatpush.bf16.msra.mxu0 %v670
        %688 = vmatpush.bf16.msra.mxu0 %v669
        %689 = vmatpush.bf16.msra.mxu0 %v668
        %690 = vmatpush.bf16.msra.mxu0 %v667
        %691 = vmatmul.bf16.gmra.mxu0 %v454
        %v692 = vpop.f32.mrf.mxu0
        %v693 = vadd.f32 0.0, %v692
        %v694 = vpop.f32.mrf.mxu0
        %695 = vdwg.mxu0
        %v696 = vadd.f32 %v617, %v693
        %697 = vst [vmem:[%s171] sm:$0xff] %v696
        %v698 = vld [vmem:[%s175] sm:$0xff]
        %699 = vset.pattern.permute.xlu0 2
        %700 = vperm.xlu0 %699, %v698
        %v701 = vpop.permute.xlu0 %700
        %vm702 = vcmp.eq.s32.totalorder %v186, %v701
        %703 = vset.pattern.permute.xlu0 6
        %704 = vperm.xlu0 %703, %v698
        %v705 = vpop.permute.xlu0 %704
        %vm706 = vcmp.eq.s32.totalorder %v186, %v705
        %vm707 = vmor %vm702, %vm706
        %v708 = vsel %vm707, 1, 0
        %v709 = vcvt.s32.f32 %v708
        %v710 = vpack.c.bf16 %v709, %v709
        %v711 = vld [vmem:[%s171] sm:$0xff]
        %s712 = scalar_lea.vmem [#allocation2], 384
        %v713 = vld [vmem:[%s712] sm:$0xf]
        %v714 = vld [vmem:[%s712 + $0x4] sm:$0xf]
        %v715 = vld [vmem:[%s712 + $0x8] sm:$0xf]
        %v716 = vld [vmem:[%s712 + $0xc] sm:$0xf]
        %v717 = vld [vmem:[%s712 + $0x10] sm:$0xf]
        %v718 = vld [vmem:[%s712 + $0x14] sm:$0xf]
        %v719 = vld [vmem:[%s712 + $0x18] sm:$0xf]
        %v720 = vld [vmem:[%s712 + $0x1c] sm:$0xf]
        %v721 = vld [vmem:[%s712 + $0x20] sm:$0xf]
        %v722 = vld [vmem:[%s712 + $0x24] sm:$0xf]
        %v723 = vld [vmem:[%s712 + $0x28] sm:$0xf]
        %v724 = vld [vmem:[%s712 + $0x2c] sm:$0xf]
        %v725 = vld [vmem:[%s712 + $0x30] sm:$0xf]
        %v726 = vld [vmem:[%s712 + $0x34] sm:$0xf]
        %v727 = vld [vmem:[%s712 + $0x38] sm:$0xf]
        %v728 = vld [vmem:[%s712 + $0x3c] sm:$0xf]
        %v745 = vunpack.c.l.b16 %v713
        %v746 = vunpack.c.l.b16 %v714
        %v747 = vunpack.c.l.b16 %v715
        %v748 = vunpack.c.l.b16 %v716
        %v749 = vunpack.c.l.b16 %v717
        %v750 = vunpack.c.l.b16 %v718
        %v751 = vunpack.c.l.b16 %v719
        %v752 = vunpack.c.l.b16 %v720
        %v753 = vunpack.c.l.b16 %v721
        %v754 = vunpack.c.l.b16 %v722
        %v755 = vunpack.c.l.b16 %v723
        %v756 = vunpack.c.l.b16 %v724
        %v757 = vunpack.c.l.b16 %v725
        %v758 = vunpack.c.l.b16 %v726
        %v759 = vunpack.c.l.b16 %v727
        %v760 = vunpack.c.l.b16 %v728
        %v761 = vpack.c.b16 %v746, %v745
        %v762 = vpack.c.b16 %v748, %v747
        %v763 = vpack.c.b16 %v750, %v749
        %v764 = vpack.c.b16 %v752, %v751
        %v765 = vpack.c.b16 %v754, %v753
        %v766 = vpack.c.b16 %v756, %v755
        %v767 = vpack.c.b16 %v758, %v757
        %v768 = vpack.c.b16 %v760, %v759
        %777 = vmatpush.bf16.msra.mxu0 %v768
        %778 = vmatpush.bf16.msra.mxu0 %v767
        %779 = vmatpush.bf16.msra.mxu0 %v766
        %780 = vmatpush.bf16.msra.mxu0 %v765
        %781 = vmatpush.bf16.msra.mxu0 %v764
        %782 = vmatpush.bf16.msra.mxu0 %v763
        %783 = vmatpush.bf16.msra.mxu0 %v762
        %784 = vmatpush.bf16.msra.mxu0 %v761
        %785 = vmatmul.bf16.gmra.mxu0 %v710
        %v786 = vpop.f32.mrf.mxu0
        %v787 = vadd.f32 0.0, %v786
        %v788 = vpop.f32.mrf.mxu0
        %789 = vdwg.mxu0
        %v790 = vadd.f32 %v711, %v787
        %791 = vst [vmem:[%s171] sm:$0xff] %v790
        %v792 = vld [vmem:[%s171] sm:$0xff]
        %s793 = scalar_lea.vmem [#allocation2], 448
        %v794 = vld [vmem:[%s793] sm:$0xf]
        %v795 = vld [vmem:[%s793 + $0x4] sm:$0xf]
        %v796 = vld [vmem:[%s793 + $0x8] sm:$0xf]
        %v797 = vld [vmem:[%s793 + $0xc] sm:$0xf]
        %v798 = vld [vmem:[%s793 + $0x10] sm:$0xf]
        %v799 = vld [vmem:[%s793 + $0x14] sm:$0xf]
        %v800 = vld [vmem:[%s793 + $0x18] sm:$0xf]
        %v801 = vld [vmem:[%s793 + $0x1c] sm:$0xf]
        %v802 = vld [vmem:[%s793 + $0x20] sm:$0xf]
        %v803 = vld [vmem:[%s793 + $0x24] sm:$0xf]
        %v804 = vld [vmem:[%s793 + $0x28] sm:$0xf]
        %v805 = vld [vmem:[%s793 + $0x2c] sm:$0xf]
        %v806 = vld [vmem:[%s793 + $0x30] sm:$0xf]
        %v807 = vld [vmem:[%s793 + $0x34] sm:$0xf]
        %v808 = vld [vmem:[%s793 + $0x38] sm:$0xf]
        %v809 = vld [vmem:[%s793 + $0x3c] sm:$0xf]
        %v826 = vunpack.c.l.b16 %v794
        %v827 = vunpack.c.l.b16 %v795
        %v828 = vunpack.c.l.b16 %v796
        %v829 = vunpack.c.l.b16 %v797
        %v830 = vunpack.c.l.b16 %v798
        %v831 = vunpack.c.l.b16 %v799
        %v832 = vunpack.c.l.b16 %v800
        %v833 = vunpack.c.l.b16 %v801
        %v834 = vunpack.c.l.b16 %v802
        %v835 = vunpack.c.l.b16 %v803
        %v836 = vunpack.c.l.b16 %v804
        %v837 = vunpack.c.l.b16 %v805
        %v838 = vunpack.c.l.b16 %v806
        %v839 = vunpack.c.l.b16 %v807
        %v840 = vunpack.c.l.b16 %v808
        %v841 = vunpack.c.l.b16 %v809
        %v842 = vpack.c.b16 %v827, %v826
        %v843 = vpack.c.b16 %v829, %v828
        %v844 = vpack.c.b16 %v831, %v830
        %v845 = vpack.c.b16 %v833, %v832
        %v846 = vpack.c.b16 %v835, %v834
        %v847 = vpack.c.b16 %v837, %v836
        %v848 = vpack.c.b16 %v839, %v838
        %v849 = vpack.c.b16 %v841, %v840
        %858 = vmatpush.bf16.msra.mxu0 %v849
        %859 = vmatpush.bf16.msra.mxu0 %v848
        %860 = vmatpush.bf16.msra.mxu0 %v847
        %861 = vmatpush.bf16.msra.mxu0 %v846
        %862 = vmatpush.bf16.msra.mxu0 %v845
        %863 = vmatpush.bf16.msra.mxu0 %v844
        %864 = vmatpush.bf16.msra.mxu0 %v843
        %865 = vmatpush.bf16.msra.mxu0 %v842
        %866 = vmatmul.bf16.gmra.mxu0 %v710
        %v867 = vpop.f32.mrf.mxu0
        %v868 = vadd.f32 0.0, %v867
        %v869 = vpop.f32.mrf.mxu0
        %870 = vdwg.mxu0
        %v871 = vadd.f32 %v792, %v868
        %872 = vst [vmem:[%s171] sm:$0xff] %v871
        %v873 = vld [vmem:[%s171] sm:$0xff]
        %s874 = scalar_lea.vmem [#allocation2], 512
        %v875 = vld [vmem:[%s874] sm:$0xf]
        %v876 = vld [vmem:[%s874 + $0x4] sm:$0xf]
        %v877 = vld [vmem:[%s874 + $0x8] sm:$0xf]
        %v878 = vld [vmem:[%s874 + $0xc] sm:$0xf]
        %v879 = vld [vmem:[%s874 + $0x10] sm:$0xf]
        %v880 = vld [vmem:[%s874 + $0x14] sm:$0xf]
        %v881 = vld [vmem:[%s874 + $0x18] sm:$0xf]
        %v882 = vld [vmem:[%s874 + $0x1c] sm:$0xf]
        %v883 = vld [vmem:[%s874 + $0x20] sm:$0xf]
        %v884 = vld [vmem:[%s874 + $0x24] sm:$0xf]
        %v885 = vld [vmem:[%s874 + $0x28] sm:$0xf]
        %v886 = vld [vmem:[%s874 + $0x2c] sm:$0xf]
        %v887 = vld [vmem:[%s874 + $0x30] sm:$0xf]
        %v888 = vld [vmem:[%s874 + $0x34] sm:$0xf]
        %v889 = vld [vmem:[%s874 + $0x38] sm:$0xf]
        %v890 = vld [vmem:[%s874 + $0x3c] sm:$0xf]
        %v907 = vunpack.c.l.b16 %v875
        %v908 = vunpack.c.l.b16 %v876
        %v909 = vunpack.c.l.b16 %v877
        %v910 = vunpack.c.l.b16 %v878
        %v911 = vunpack.c.l.b16 %v879
        %v912 = vunpack.c.l.b16 %v880
        %v913 = vunpack.c.l.b16 %v881
        %v914 = vunpack.c.l.b16 %v882
        %v915 = vunpack.c.l.b16 %v883
        %v916 = vunpack.c.l.b16 %v884
        %v917 = vunpack.c.l.b16 %v885
        %v918 = vunpack.c.l.b16 %v886
        %v919 = vunpack.c.l.b16 %v887
        %v920 = vunpack.c.l.b16 %v888
        %v921 = vunpack.c.l.b16 %v889
        %v922 = vunpack.c.l.b16 %v890
        %v923 = vpack.c.b16 %v908, %v907
        %v924 = vpack.c.b16 %v910, %v909
        %v925 = vpack.c.b16 %v912, %v911
        %v926 = vpack.c.b16 %v914, %v913
        %v927 = vpack.c.b16 %v916, %v915
        %v928 = vpack.c.b16 %v918, %v917
        %v929 = vpack.c.b16 %v920, %v919
        %v930 = vpack.c.b16 %v922, %v921
        %939 = vmatpush.bf16.msra.mxu0 %v930
        %940 = vmatpush.bf16.msra.mxu0 %v929
        %941 = vmatpush.bf16.msra.mxu0 %v928
        %942 = vmatpush.bf16.msra.mxu0 %v927
        %943 = vmatpush.bf16.msra.mxu0 %v926
        %944 = vmatpush.bf16.msra.mxu0 %v925
        %945 = vmatpush.bf16.msra.mxu0 %v924
        %946 = vmatpush.bf16.msra.mxu0 %v923
        %947 = vmatmul.bf16.gmra.mxu0 %v710
        %v948 = vpop.f32.mrf.mxu0
        %v949 = vadd.f32 0.0, %v948
        %v950 = vpop.f32.mrf.mxu0
        %951 = vdwg.mxu0
        %v952 = vadd.f32 %v873, %v949
        %953 = vst [vmem:[%s171] sm:$0xff] %v952
        %v954 = vld [vmem:[%s175] sm:$0xff]
        %955 = vset.pattern.permute.xlu0 3
        %956 = vperm.xlu0 %955, %v954
        %v957 = vpop.permute.xlu0 %956
        %vm958 = vcmp.eq.s32.totalorder %v186, %v957
        %959 = vset.pattern.permute.xlu0 7
        %960 = vperm.xlu0 %959, %v954
        %v961 = vpop.permute.xlu0 %960
        %vm962 = vcmp.eq.s32.totalorder %v186, %v961
        %vm963 = vmor %vm958, %vm962
        %v964 = vsel %vm963, 1, 0
        %v965 = vcvt.s32.f32 %v964
        %v966 = vpack.c.bf16 %v965, %v965
        %v967 = vld [vmem:[%s171] sm:$0xff]
        %s968 = scalar_lea.vmem [#allocation2], 576
        %v969 = vld [vmem:[%s968] sm:$0xf]
        %v970 = vld [vmem:[%s968 + $0x4] sm:$0xf]
        %v971 = vld [vmem:[%s968 + $0x8] sm:$0xf]
        %v972 = vld [vmem:[%s968 + $0xc] sm:$0xf]
        %v973 = vld [vmem:[%s968 + $0x10] sm:$0xf]
        %v974 = vld [vmem:[%s968 + $0x14] sm:$0xf]
        %v975 = vld [vmem:[%s968 + $0x18] sm:$0xf]
        %v976 = vld [vmem:[%s968 + $0x1c] sm:$0xf]
        %v977 = vld [vmem:[%s968 + $0x20] sm:$0xf]
        %v978 = vld [vmem:[%s968 + $0x24] sm:$0xf]
        %v979 = vld [vmem:[%s968 + $0x28] sm:$0xf]
        %v980 = vld [vmem:[%s968 + $0x2c] sm:$0xf]
        %v981 = vld [vmem:[%s968 + $0x30] sm:$0xf]
        %v982 = vld [vmem:[%s968 + $0x34] sm:$0xf]
        %v983 = vld [vmem:[%s968 + $0x38] sm:$0xf]
        %v984 = vld [vmem:[%s968 + $0x3c] sm:$0xf]
        %v1001 = vunpack.c.l.b16 %v969
        %v1002 = vunpack.c.l.b16 %v970
        %v1003 = vunpack.c.l.b16 %v971
        %v1004 = vunpack.c.l.b16 %v972
        %v1005 = vunpack.c.l.b16 %v973
        %v1006 = vunpack.c.l.b16 %v974
        %v1007 = vunpack.c.l.b16 %v975
        %v1008 = vunpack.c.l.b16 %v976
        %v1009 = vunpack.c.l.b16 %v977
        %v1010 = vunpack.c.l.b16 %v978
        %v1011 = vunpack.c.l.b16 %v979
        %v1012 = vunpack.c.l.b16 %v980
        %v1013 = vunpack.c.l.b16 %v981
        %v1014 = vunpack.c.l.b16 %v982
        %v1015 = vunpack.c.l.b16 %v983
        %v1016 = vunpack.c.l.b16 %v984
        %v1017 = vpack.c.b16 %v1002, %v1001
        %v1018 = vpack.c.b16 %v1004, %v1003
        %v1019 = vpack.c.b16 %v1006, %v1005
        %v1020 = vpack.c.b16 %v1008, %v1007
        %v1021 = vpack.c.b16 %v1010, %v1009
        %v1022 = vpack.c.b16 %v1012, %v1011
        %v1023 = vpack.c.b16 %v1014, %v1013
        %v1024 = vpack.c.b16 %v1016, %v1015
        %1033 = vmatpush.bf16.msra.mxu0 %v1024
        %1034 = vmatpush.bf16.msra.mxu0 %v1023
        %1035 = vmatpush.bf16.msra.mxu0 %v1022
        %1036 = vmatpush.bf16.msra.mxu0 %v1021
        %1037 = vmatpush.bf16.msra.mxu0 %v1020
        %1038 = vmatpush.bf16.msra.mxu0 %v1019
        %1039 = vmatpush.bf16.msra.mxu0 %v1018
        %1040 = vmatpush.bf16.msra.mxu0 %v1017
        %1041 = vmatmul.bf16.gmra.mxu0 %v966
        %v1042 = vpop.f32.mrf.mxu0
        %v1043 = vadd.f32 0.0, %v1042
        %v1044 = vpop.f32.mrf.mxu0
        %1045 = vdwg.mxu0
        %v1046 = vadd.f32 %v967, %v1043
        %1047 = vst [vmem:[%s171] sm:$0xff] %v1046
        %v1048 = vld [vmem:[%s171] sm:$0xff]
        %s1049 = scalar_lea.vmem [#allocation2], 640
        %v1050 = vld [vmem:[%s1049] sm:$0xf]
        %v1051 = vld [vmem:[%s1049 + $0x4] sm:$0xf]
        %v1052 = vld [vmem:[%s1049 + $0x8] sm:$0xf]
        %v1053 = vld [vmem:[%s1049 + $0xc] sm:$0xf]
        %v1054 = vld [vmem:[%s1049 + $0x10] sm:$0xf]
        %v1055 = vld [vmem:[%s1049 + $0x14] sm:$0xf]
        %v1056 = vld [vmem:[%s1049 + $0x18] sm:$0xf]
        %v1057 = vld [vmem:[%s1049 + $0x1c] sm:$0xf]
        %v1058 = vld [vmem:[%s1049 + $0x20] sm:$0xf]
        %v1059 = vld [vmem:[%s1049 + $0x24] sm:$0xf]
        %v1060 = vld [vmem:[%s1049 + $0x28] sm:$0xf]
        %v1061 = vld [vmem:[%s1049 + $0x2c] sm:$0xf]
        %v1062 = vld [vmem:[%s1049 + $0x30] sm:$0xf]
        %v1063 = vld [vmem:[%s1049 + $0x34] sm:$0xf]
        %v1064 = vld [vmem:[%s1049 + $0x38] sm:$0xf]
        %v1065 = vld [vmem:[%s1049 + $0x3c] sm:$0xf]
        %v1082 = vunpack.c.l.b16 %v1050
        %v1083 = vunpack.c.l.b16 %v1051
        %v1084 = vunpack.c.l.b16 %v1052
        %v1085 = vunpack.c.l.b16 %v1053
        %v1086 = vunpack.c.l.b16 %v1054
        %v1087 = vunpack.c.l.b16 %v1055
        %v1088 = vunpack.c.l.b16 %v1056
        %v1089 = vunpack.c.l.b16 %v1057
        %v1090 = vunpack.c.l.b16 %v1058
        %v1091 = vunpack.c.l.b16 %v1059
        %v1092 = vunpack.c.l.b16 %v1060
        %v1093 = vunpack.c.l.b16 %v1061
        %v1094 = vunpack.c.l.b16 %v1062
        %v1095 = vunpack.c.l.b16 %v1063
        %v1096 = vunpack.c.l.b16 %v1064
        %v1097 = vunpack.c.l.b16 %v1065
        %v1098 = vpack.c.b16 %v1083, %v1082
        %v1099 = vpack.c.b16 %v1085, %v1084
        %v1100 = vpack.c.b16 %v1087, %v1086
        %v1101 = vpack.c.b16 %v1089, %v1088
        %v1102 = vpack.c.b16 %v1091, %v1090
        %v1103 = vpack.c.b16 %v1093, %v1092
        %v1104 = vpack.c.b16 %v1095, %v1094
        %v1105 = vpack.c.b16 %v1097, %v1096
        %1114 = vmatpush.bf16.msra.mxu0 %v1105
        %1115 = vmatpush.bf16.msra.mxu0 %v1104
        %1116 = vmatpush.bf16.msra.mxu0 %v1103
        %1117 = vmatpush.bf16.msra.mxu0 %v1102
        %1118 = vmatpush.bf16.msra.mxu0 %v1101
        %1119 = vmatpush.bf16.msra.mxu0 %v1100
        %1120 = vmatpush.bf16.msra.mxu0 %v1099
        %1121 = vmatpush.bf16.msra.mxu0 %v1098
        %1122 = vmatmul.bf16.gmra.mxu0 %v966
        %v1123 = vpop.f32.mrf.mxu0
        %v1124 = vadd.f32 0.0, %v1123
        %v1125 = vpop.f32.mrf.mxu0
        %1126 = vdwg.mxu0
        %v1127 = vadd.f32 %v1048, %v1124
        %1128 = vst [vmem:[%s171] sm:$0xff] %v1127
        %v1129 = vld [vmem:[%s171] sm:$0xff]
        %s1130 = scalar_lea.vmem [#allocation2], 704
        %v1131 = vld [vmem:[%s1130] sm:$0xf]
        %v1132 = vld [vmem:[%s1130 + $0x4] sm:$0xf]
        %v1133 = vld [vmem:[%s1130 + $0x8] sm:$0xf]
        %v1134 = vld [vmem:[%s1130 + $0xc] sm:$0xf]
        %v1135 = vld [vmem:[%s1130 + $0x10] sm:$0xf]
        %v1136 = vld [vmem:[%s1130 + $0x14] sm:$0xf]
        %v1137 = vld [vmem:[%s1130 + $0x18] sm:$0xf]
        %v1138 = vld [vmem:[%s1130 + $0x1c] sm:$0xf]
        %v1139 = vld [vmem:[%s1130 + $0x20] sm:$0xf]
        %v1140 = vld [vmem:[%s1130 + $0x24] sm:$0xf]
        %v1141 = vld [vmem:[%s1130 + $0x28] sm:$0xf]
        %v1142 = vld [vmem:[%s1130 + $0x2c] sm:$0xf]
        %v1143 = vld [vmem:[%s1130 + $0x30] sm:$0xf]
        %v1144 = vld [vmem:[%s1130 + $0x34] sm:$0xf]
        %v1145 = vld [vmem:[%s1130 + $0x38] sm:$0xf]
        %v1146 = vld [vmem:[%s1130 + $0x3c] sm:$0xf]
        %v1163 = vunpack.c.l.b16 %v1131
        %v1164 = vunpack.c.l.b16 %v1132
        %v1165 = vunpack.c.l.b16 %v1133
        %v1166 = vunpack.c.l.b16 %v1134
        %v1167 = vunpack.c.l.b16 %v1135
        %v1168 = vunpack.c.l.b16 %v1136
        %v1169 = vunpack.c.l.b16 %v1137
        %v1170 = vunpack.c.l.b16 %v1138
        %v1171 = vunpack.c.l.b16 %v1139
        %v1172 = vunpack.c.l.b16 %v1140
        %v1173 = vunpack.c.l.b16 %v1141
        %v1174 = vunpack.c.l.b16 %v1142
        %v1175 = vunpack.c.l.b16 %v1143
        %v1176 = vunpack.c.l.b16 %v1144
        %v1177 = vunpack.c.l.b16 %v1145
        %v1178 = vunpack.c.l.b16 %v1146
        %v1179 = vpack.c.b16 %v1164, %v1163
        %v1180 = vpack.c.b16 %v1166, %v1165
        %v1181 = vpack.c.b16 %v1168, %v1167
        %v1182 = vpack.c.b16 %v1170, %v1169
        %v1183 = vpack.c.b16 %v1172, %v1171
        %v1184 = vpack.c.b16 %v1174, %v1173
        %v1185 = vpack.c.b16 %v1176, %v1175
        %v1186 = vpack.c.b16 %v1178, %v1177
        %1195 = vmatpush.bf16.msra.mxu0 %v1186
        %1196 = vmatpush.bf16.msra.mxu0 %v1185
        %1197 = vmatpush.bf16.msra.mxu0 %v1184
        %1198 = vmatpush.bf16.msra.mxu0 %v1183
        %1199 = vmatpush.bf16.msra.mxu0 %v1182
        %1200 = vmatpush.bf16.msra.mxu0 %v1181
        %1201 = vmatpush.bf16.msra.mxu0 %v1180
        %1202 = vmatpush.bf16.msra.mxu0 %v1179
        %1203 = vmatmul.bf16.gmra.mxu0 %v966
        %v1204 = vpop.f32.mrf.mxu0
        %v1205 = vadd.f32 0.0, %v1204
        %v1206 = vpop.f32.mrf.mxu0
        %1207 = vdwg.mxu0
        %v1208 = vadd.f32 %v1129, %v1205
        %1209 = vst [vmem:[%s171] sm:$0xff] %v1208
        %s1210 = sand.u32 %s89, 1
        %s1211 = scalar_lea.sflag [#allocation4], %s1210
        %s1212 = sand.u32 %s89, 1
        %s1213 = smul.addr %s1212, 8
        %s1214 = scalar_lea.vmem [#allocation5], %s1213
        // Predicated region
        $region37: #{tpu_custom_call.1} parent=27 // pred_check
          %p1215 = pneg %p99
        $region38: #{tpu_custom_call.1} parent=27 // pred_check_branch
          %1217 = sbr.rel (%p1215) target = $region40
        $region39: #{tpu_custom_call.1} parent=27 // pred_region
          %1219 = vsyncadd %s1211, 0
          %s1220 = smul.addr %s21, 8
          %s1221 = scalar_lea.hbm %s2, %s1220
          %s1223 = sshll.u32 %s1214, 4
          %s1224 = int_to_ptr.vmem [resolvable:$true] %s1223
          %s1225 = sshll.u32 %s1221, 4
          %s1226 = int_to_ptr.hbm [resolvable:$true] %s1225
          %1228 = dma.vmem_to_hbm [thread:$0]  %s1224, 128, %s1226, %s1211
        $region40: #{tpu_custom_call.1} parent=27 // pred_fallthru
          _
      $region28: #{tpu_custom_call.1} parent=5 // pred_fallthru
        _
      %p1229 = scmp.le.s32.totalorder 2, %s12
      // Predicated region
      $region41: #{tpu_custom_call.1} parent=5 // pred_check
        %p1230 = pneg %p1229
      $region42: #{tpu_custom_call.1} parent=5 // pred_check_branch
        %1232 = sbr.rel (%p1230) target = $region44
      $region43: #{tpu_custom_call.1} parent=5 // pred_region
        %s1233 = ssub.s32 %s12, 2
        // Predicated region
        $region45: #{tpu_custom_call.1} parent=43 // pred_check
          %p1234 = pneg %p105
        $region46: #{tpu_custom_call.1} parent=43 // pred_check_branch
          %1236 = sbr.rel (%p1234) target = $region48
        $region47: #{tpu_custom_call.1} parent=43 // pred_region
          %s1237 = sand.u32 %s90, 1
          %s1238 = scalar_lea.sflag [#allocation4], %s1237
          %s1239 = sand.u32 %s90, 1
          %s1240 = smul.addr %s1239, 8
          %s1241 = scalar_lea.vmem [#allocation5], %s1240
          %1243 = dma.done %s1238, 128
        $region48: #{tpu_custom_call.1} parent=43 // pred_fallthru
          _
      $region44: #{tpu_custom_call.1} parent=5 // pred_fallthru
        _
    $region6: #{tpu_custom_call.1} parent=1 // loop_footer
      %s16 = sadd.s32 1, %s12
    $region7: #{tpu_custom_call.1} parent=1 // loop_footer_branch
      %11 = sbr.rel target = $region3
    $region8: #{tpu_custom_call.1} parent=1 // loop_exit
      _
    %1244 = vsyncpa [#allocation3], 1
    %s1245 = scalar_lea.sflag [#allocation3], 1
    %1246 = vsyncpa %s1245, 1
    %1247 = vsyncpa [#allocation4], 1
    %s1248 = scalar_lea.sflag [#allocation4], 1
    %1249 = vsyncpa %s1248, 1

</llo_original>
